<compile_context>
chip_gen: v6e
topology: v6e:2x2x1
jax: 0.10.0
libtpu: 0.0.40
codegen_flags: <defaults>
</compile_context>

<pallas_src>
import functools
import math

import jax
import jax.numpy as jnp
from jax.experimental import pallas as pl
from jax.experimental.pallas import tpu as pltpu


_VMEM_LIMIT = 32 * 1024 * 1024       # explicit scoped-VMEM cap, safe on v5e/v6e/v7x
_BLOCK_BUDGET = 4 * 1024 * 1024      # ~4 MiB per x block (x2 dbl-buffer, x(in+out) = 16 MiB)
_MIN_BLOCK_BYTES = 512 * 1024        # don't shrink blocks below this for grid-step count
_MIN_GRID_STEPS = 4                  # keep pipeline primed + megacore shardable


def _cdiv(a, b):
    return -(-a // b)


def _round_up(v, m):
    return _cdiv(v, m) * m


def _sublane(itemsize):
    # sublane packing factor: 8 rows for f32, 16 for bf16, 32 for int8
    return max(8, 32 // max(1, itemsize))


def _shrink_for_min_steps(tile, extent, other_steps, bytes_per_unit, align):
    """Shrink `tile` so total grid steps >= _MIN_GRID_STEPS, but never below
    _MIN_BLOCK_BYTES per block (tiny inputs keep one big block)."""
    while other_steps * _cdiv(extent, tile) < _MIN_GRID_STEPS:
        cand = max(align, (tile // 2) // align * align)
        if cand >= tile or cand * bytes_per_unit < _MIN_BLOCK_BYTES:
            break
        tile = cand
    return tile


# --------------------------------------------------------------------------
# channels_first: layout NCHW, reduction over C (axis=1).
# Wrapper reshapes to (N, C, S=H*W); kernel sees lane-dense (C, TS) tiles.
# Edge (cdiv) spatial blocks read padding lanes, which is safe because the
# reduction is independent per lane and edge stores are masked -- keep that
# invariant if the reduction structure changes.
# --------------------------------------------------------------------------
def _ln_cf_kernel(x_ref, wb_ref, o_ref, *, eps):
    x = x_ref[...].astype(jnp.float32)             # (C, TS)
    u = jnp.mean(x, axis=0, keepdims=True)         # (1, TS) sublane reduce (XLU)
    d = x - u
    s = jnp.mean(d * d, axis=0, keepdims=True)     # biased var, matches .pow(2).mean
    y = d * jax.lax.rsqrt(s + eps)
    wb = wb_ref[...]                               # (C, 2) f32: [:,0]=weight, [:,1]=bias
    w = wb[:, 0:1]                                 # (C, 1) -> lane splat
    b = wb[:, 1:2]
    o_ref[...] = (y * w + b).astype(o_ref.dtype)


def _pick_spatial_tile(n, c, s, itemsize):
    # account for sublane padding of the (C, TS) tile (C < 8 still occupies 8
    # sublanes per vreg -> tiny-C channels_first can't reach full VPU/vreg
    # throughput without a layout change; this only keeps the VMEM math honest).
    c_pad = _round_up(c, _sublane(itemsize))
    unit = c_pad * itemsize                        # bytes per spatial lane column
    ts = max(128, (_BLOCK_BUDGET // unit) // 128 * 128)
    if ts >= s:
        ts = s                                     # full extent is always legal
    return _shrink_for_min_steps(ts, s, n, unit, 128)


def layer_norm_channels_first(x, weight, bias, eps=1e-6, *, spatial_tile=None):
    """x: (N, C, H, W); weight/bias: (C,). Matches the PyTorch channels_first branch."""
    n, c, h, w = x.shape
    s = h * w
    x3 = x.reshape(n, c, s)                               # free metadata reshape
    wb = jnp.stack([weight.astype(jnp.float32),
                    bias.astype(jnp.float32)], axis=-1)   # (C, 2)

    ts = spatial_tile if spatial_tile is not None else _pick_spatial_tile(
        n, c, s, x.dtype.itemsize)
    ts = min(ts, s)
    grid = (n, _cdiv(s, ts))
    # TODO(synk): for late stages with S = H*W < 128 (e.g. 7x7) output stores
    # are lane-masked (vst.msk); keeping those stages channels_last upstream is
    # the real fix -- an in-kernel transpose would add an extra HBM pass.

    out = pl.pallas_call(
        functools.partial(_ln_cf_kernel, eps=eps),
        out_shape=jax.ShapeDtypeStruct((n, c, s), x.dtype),
        grid_spec=pltpu.PrefetchScalarGridSpec(
            num_scalar_prefetch=0,
            grid=grid,
            in_specs=[
                pl.BlockSpec((None, c, ts), lambda i, j: (i, 0, j)),
                pl.BlockSpec((c, 2), lambda i, j: (0, 0)),
            ],
            out_specs=pl.BlockSpec((None, c, ts), lambda i, j: (i, 0, j)),
        ),
        compiler_params=pltpu.CompilerParams(
            dimension_semantics=("parallel", "parallel"),
            vmem_limit_bytes=_VMEM_LIMIT,
        ),
    )(x3, wb)
    return out.reshape(n, c, h, w)


# --------------------------------------------------------------------------
# channels_last: normalization over the last axis (standard layer_norm).
# Two paths:
#   * packed (C < 128, 128 % C == 0): G = 128 // C rows share one 128-lane
#     vector; per-row mean/variance broadcast is one (128,128) block-diagonal
#     averaging matmul on the otherwise-idle MXU (single bf16 pass via a hi/lo
#     split of the f32 operand).
#   * general: (rows, C) tiles, cdiv grid, masked edge block.
# --------------------------------------------------------------------------
def _ln_cl_kernel(x_ref, w_ref, b_ref, o_ref, *, eps):
    x = x_ref[...].astype(jnp.float32)             # (TR, C)
    u = jnp.mean(x, axis=-1, keepdims=True)
    d = x - u
    s = jnp.mean(d * d, axis=-1, keepdims=True)
    y = d * jax.lax.rsqrt(s + eps)
    o_ref[...] = (y * w_ref[...] + b_ref[...]).astype(o_ref.dtype)


def _ln_cl_packed_kernel(x_ref, w_ref, b_ref, p_ref, o_ref, *, eps):
    x = x_ref[...].astype(jnp.float32)             # (TR, 128)
    p = p_ref[...]                                 # (128, 128) bf16 block-diag averaging
    # hi/lo bf16 split: P entries (0 and 1/C, C a power of two) are exact in
    # bf16, so the only error is rounding the f32 residual to bf16
    # (~2**-17 relative) -- 2 single-pass MXU matmuls per reduction.
    x_hi = x.astype(jnp.bfloat16)
    x_lo = (x - x_hi.astype(jnp.float32)).astype(jnp.bfloat16)
    u = (jnp.dot(x_hi, p, preferred_element_type=jnp.float32)
         + jnp.dot(x_lo, p, preferred_element_type=jnp.float32))
    d = x - u
    dd = d * d
    dd_hi = dd.astype(jnp.bfloat16)
    dd_lo = (dd - dd_hi.astype(jnp.float32)).astype(jnp.bfloat16)
    s = (jnp.dot(dd_hi, p, preferred_element_type=jnp.float32)
         + jnp.dot(dd_lo, p, preferred_element_type=jnp.float32))
    y = d * jax.lax.rsqrt(s + eps)
    o_ref[...] = (y * w_ref[...] + b_ref[...]).astype(o_ref.dtype)


def _pick_row_tile(rows, width, itemsize):
    w_pad = _round_up(width, 128)                  # lane padding
    unit = w_pad * itemsize                        # bytes per row
    tr = max(8, (_BLOCK_BUDGET // unit) // 8 * 8)
    if tr >= rows:
        tr = rows
    return _shrink_for_min_steps(tr, rows, 1, unit, 8)


def layer_norm_channels_last(x, weight, bias, eps=1e-6, *, row_tile=None):
    """x: (..., C); weight/bias: (C,). Matches F.layer_norm over the last axis."""
    orig_shape = x.shape
    c = orig_shape[-1]
    rows = math.prod(orig_shape[:-1]) if len(orig_shape) > 1 else 1

    params = pltpu.CompilerParams(dimension_semantics=("parallel",),
                                  vmem_limit_bytes=_VMEM_LIMIT)

    if c < 128 and 128 % c == 0:
        # Lane-dense packed path. 128 % C == 0 => C is a power of two => 1/C is
        # exact in bf16. Pad rows to a multiple of G instead of falling back to
        # the lane-sparse general path (padding is one extra streaming pass,
        # the fallback is ~an order of magnitude slower for tiny C).
        g = 128 // c
        lanes = g * c                                  # == 128
        x2 = x.reshape(rows, c)
        rows_pad = _round_up(rows, g)
        if rows_pad != rows:
            x2 = jnp.pad(x2, ((0, rows_pad - rows), (0, 0)))
        rp = rows_pad // g
        x2 = x2.reshape(rp, lanes)                     # contiguity-preserving
        w2 = jnp.tile(weight.astype(jnp.float32), g).reshape(1, lanes)
        b2 = jnp.tile(bias.astype(jnp.float32), g).reshape(1, lanes)
        # Block-diagonal averaging matrix P[i, j] = (i//C == j//C) / C.
        lane = jnp.arange(lanes)
        p = ((lane[:, None] // c) == (lane[None, :] // c)).astype(jnp.float32) / c
        p = p.astype(jnp.bfloat16)                     # entries 0 and 1/C: exact

        tr = row_tile if row_tile is not None else _pick_row_tile(
            rp, lanes, x.dtype.itemsize)
        tr = min(tr, rp)
        out = pl.pallas_call(
            functools.partial(_ln_cl_packed_kernel, eps=eps),
            out_shape=jax.ShapeDtypeStruct((rp, lanes), x.dtype),
            grid_spec=pltpu.PrefetchScalarGridSpec(
                num_scalar_prefetch=0,
                grid=(_cdiv(rp, tr),),
                in_specs=[
                    pl.BlockSpec((tr, lanes), lambda i: (i, 0)),
                    pl.BlockSpec((1, lanes), lambda i: (0, 0)),
                    pl.BlockSpec((1, lanes), lambda i: (0, 0)),
                    pl.BlockSpec((lanes, lanes), lambda i: (0, 0)),
                ],
                out_specs=pl.BlockSpec((tr, lanes), lambda i: (i, 0)),
            ),
            compiler_params=params,
        )(x2, w2, b2, p)
        out = out.reshape(rows_pad, c)
        if rows_pad != rows:
            out = out[:rows]
        return out.reshape(orig_shape)

    # General path: (rows, C) tiles; cdiv grid masks the edge block.
    # TODO(synk): for C < 128 with 128 % C != 0 (e.g. C=96), lanes still pad to 128.
    x2 = x.reshape(rows, c)
    w2 = weight.astype(jnp.float32).reshape(1, c)
    b2 = bias.astype(jnp.float32).reshape(1, c)
    tr = row_tile if row_tile is not None else _pick_row_tile(
        rows, c, x.dtype.itemsize)
    tr = min(tr, rows)
    out = pl.pallas_call(
        functools.partial(_ln_cl_kernel, eps=eps),
        out_shape=jax.ShapeDtypeStruct((rows, c), x.dtype),
        grid_spec=pltpu.PrefetchScalarGridSpec(
            num_scalar_prefetch=0,
            grid=(_cdiv(rows, tr),),
            in_specs=[
                pl.BlockSpec((tr, c), lambda i: (i, 0)),
                pl.BlockSpec((1, c), lambda i: (0, 0)),
                pl.BlockSpec((1, c), lambda i: (0, 0)),
            ],
            out_specs=pl.BlockSpec((tr, c), lambda i: (i, 0)),
        ),
        compiler_params=params,
    )(x2, w2, b2)
    return out.reshape(orig_shape)


# --------------------------------------------------------------------------
# Pure-JAX references (mirror the PyTorch forward exactly)
# --------------------------------------------------------------------------
def _ref_channels_first(x, weight, bias, eps):
    u = jnp.mean(x, axis=1, keepdims=True)
    s = jnp.mean((x - u) ** 2, axis=1, keepdims=True)
    y = (x - u) / jnp.sqrt(s + eps)
    return weight[None, :, None, None] * y + bias[None, :, None, None]


def _ref_channels_last(x, weight, bias, eps):
    u = jnp.mean(x, axis=-1, keepdims=True)
    s = jnp.mean((x - u) ** 2, axis=-1, keepdims=True)
    y = (x - u) / jnp.sqrt(s + eps)
    return weight * y + bias


if __name__ == "__main__":
    key = jax.random.PRNGKey(0)
    k1, k2, k3, k4, k5, k6, k7, k8, k9, k10 = jax.random.split(key, 10)
    eps = 1e-6

    # 1) channels_first, module-style params (weight=ones, bias=zeros), NCHW.
    N, C, H, W = 2, 4, 16, 16
    w_cf = jnp.ones((C,), jnp.float32)
    b_cf = jnp.zeros((C,), jnp.float32)
    x_cf = jax.random.normal(k1, (N, C, H, W), dtype=jnp.float32)
    out = jax.block_until_ready(layer_norm_channels_first(x_cf, w_cf, b_cf, eps))
    ref = _ref_channels_first(x_cf, w_cf, b_cf, eps)
    assert out.shape == x_cf.shape and out.dtype == x_cf.dtype
    assert jnp.allclose(out, ref, atol=1e-5, rtol=1e-5)

    # 2) channels_first, partial spatial tile (S=529 with TS=128) + random affine.
    C2 = 64
    x_cf2 = jax.random.normal(k2, (2, C2, 23, 23), dtype=jnp.float32)
    w_cf2 = jax.random.normal(k3, (C2,), dtype=jnp.float32)
    b_cf2 = jax.random.normal(k4, (C2,), dtype=jnp.float32)
    out2 = jax.block_until_ready(
        layer_norm_channels_first(x_cf2, w_cf2, b_cf2, eps, spatial_tile=128))
    ref2 = _ref_channels_first(x_cf2, w_cf2, b_cf2, eps)
    assert jnp.allclose(out2, ref2, atol=1e-5, rtol=1e-5)

    # 3) channels_last, small C (packed lane-dense path), NHWC + random affine.
    #    bf16 hi/lo split bound ~2**-17 relative, amplified by |weight| -> 3e-5 atol.
    x_cl = jax.random.normal(k5, (N, H, W, C), dtype=jnp.float32)
    w_cl = jax.random.normal(k6, (C,), dtype=jnp.float32)
    b_cl = jax.random.normal(k7, (C,), dtype=jnp.float32)
    out3 = jax.block_until_ready(layer_norm_channels_last(x_cl, w_cl, b_cl, eps))
    ref3 = _ref_channels_last(x_cl, w_cl, b_cl, eps)
    assert out3.shape == x_cl.shape and out3.dtype == x_cl.dtype
    assert jnp.allclose(out3, ref3, atol=3e-5, rtol=1e-5)

    # 4) channels_last, C >= 128 general path with a non-dividing row tile
    #    (rows=105, tile=32 -> masked edge block).
    C4 = 128
    x_cl2 = jax.random.normal(k8, (3, 7, 5, C4), dtype=jnp.float32)
    w_cl2 = jax.random.normal(k9, (C4,), dtype=jnp.float32)
    b_cl2 = jnp.zeros((C4,), jnp.float32)
    out4 = jax.block_until_ready(
        layer_norm_channels_last(x_cl2, w_cl2, b_cl2, eps, row_tile=32))
    ref4 = _ref_channels_last(x_cl2, w_cl2, b_cl2, eps)
    assert jnp.allclose(out4, ref4, atol=1e-5, rtol=1e-5)

    # 5) channels_last, small C with rows % G != 0 (rows=105, G=32): padded
    #    packed path instead of the lane-sparse fallback.
    x_cl3 = jax.random.normal(k10, (3, 5, 7, C), dtype=jnp.float32)
    out5 = jax.block_until_ready(layer_norm_channels_last(x_cl3, w_cl, b_cl, eps))
    ref5 = _ref_channels_last(x_cl3, w_cl, b_cl, eps)
    assert out5.shape == x_cl3.shape and out5.dtype == x_cl3.dtype
    assert jnp.allclose(out5, ref5, atol=3e-5, rtol=1e-5)

    print("KERNEL_OK")
</pallas_src>

<mosaic_0001>
module attributes {stable_mosaic.version = 11 : i64} {
  func.func @_ln_cf_kernel(%arg0: i32, %arg1: i32, %arg2: memref<1x4x256xf32, #tpu.memory_space<vmem>>, %arg3: memref<4x2xf32, #tpu.memory_space<vmem>>, %arg4: memref<1x4x256xf32, #tpu.memory_space<vmem>>) attributes {dimension_semantics = [#tpu.dimension_semantics<parallel>, #tpu.dimension_semantics<parallel>], iteration_bounds = array<i64: 2, 1>, scalar_prefetch = 0 : i64, scratch_operands = 0 : i64, tpu.core_type = #tpu.core_type<tc>, window_params = [{transform_indices = @transform_0, window_bounds = array<i64: 1, 4, 256>}, {pipeline_mode = #tpu.pipeline_mode<synchronous>, transform_indices = @transform_1, window_bounds = array<i64: 4, 2>}, {transform_indices = @transform_2, window_bounds = array<i64: 1, 4, 256>}]} {
    %c0 = arith.constant 0 : index
    %c0_0 = arith.constant 0 : index
    %c0_1 = arith.constant 0 : index
    %0 = vector.load %arg2[%c0, %c0_0, %c0_1] : memref<1x4x256xf32, #tpu.memory_space<vmem>>, vector<1x4x256xf32>
    %1 = vector.shape_cast %0 : vector<1x4x256xf32> to vector<4x256xf32>
    %cst = arith.constant dense<0.000000e+00> : vector<256xf32>
    %2 = vector.multi_reduction <add>, %1, %cst [0] : vector<4x256xf32> to vector<256xf32>
    %3 = vector.shape_cast %2 : vector<256xf32> to vector<1x256xf32>
    %cst_2 = arith.constant 4.000000e+00 : f32
    %4 = vector.broadcast %cst_2 : f32 to vector<1x256xf32>
    %5 = arith.divf %3, %4 : vector<1x256xf32>
    %6 = vector.broadcast %5 : vector<1x256xf32> to vector<4x256xf32>
    %7 = arith.subf %1, %6 : vector<4x256xf32>
    %8 = arith.mulf %7, %7 : vector<4x256xf32>
    %cst_3 = arith.constant dense<0.000000e+00> : vector<256xf32>
    %9 = vector.multi_reduction <add>, %8, %cst_3 [0] : vector<4x256xf32> to vector<256xf32>
    %10 = vector.shape_cast %9 : vector<256xf32> to vector<1x256xf32>
    %cst_4 = arith.constant 4.000000e+00 : f32
    %11 = vector.broadcast %cst_4 : f32 to vector<1x256xf32>
    %12 = arith.divf %10, %11 : vector<1x256xf32>
    %cst_5 = arith.constant 9.99999997E-7 : f32
    %13 = vector.broadcast %cst_5 : f32 to vector<1x256xf32>
    %14 = arith.addf %12, %13 : vector<1x256xf32>
    %15 = math.rsqrt %14 : vector<1x256xf32>
    %16 = vector.broadcast %15 : vector<1x256xf32> to vector<4x256xf32>
    %17 = arith.mulf %7, %16 : vector<4x256xf32>
    %c0_6 = arith.constant 0 : index
    %c0_7 = arith.constant 0 : index
    %18 = vector.load %arg3[%c0_6, %c0_7] : memref<4x2xf32, #tpu.memory_space<vmem>>, vector<4x2xf32>
    %19 = vector.extract_strided_slice %18 {offsets = [0, 0], sizes = [4, 1], strides = [1, 1]} : vector<4x2xf32> to vector<4x1xf32>
    %20 = vector.extract_strided_slice %18 {offsets = [0, 1], sizes = [4, 1], strides = [1, 1]} : vector<4x2xf32> to vector<4x1xf32>
    %21 = vector.broadcast %19 : vector<4x1xf32> to vector<4x256xf32>
    %22 = arith.mulf %17, %21 : vector<4x256xf32>
    %23 = vector.broadcast %20 : vector<4x1xf32> to vector<4x256xf32>
    %24 = arith.addf %22, %23 : vector<4x256xf32>
    %c0_8 = arith.constant 0 : index
    %c0_9 = arith.constant 0 : index
    %c0_10 = arith.constant 0 : index
    %25 = vector.load %arg4[%c0_8, %c0_9, %c0_10] : memref<1x4x256xf32, #tpu.memory_space<vmem>>, vector<1x4x256xf32>
    %26 = vector.shape_cast %25 : vector<1x4x256xf32> to vector<4x256xf32>
    %27 = vector.shape_cast %24 : vector<4x256xf32> to vector<1x4x256xf32>
    tpu.vector_store %arg4[%c0_8, %c0_9, %c0_10], %27 {strides = array<i32>} : memref<1x4x256xf32, #tpu.memory_space<vmem>>, vector<1x4x256xf32>,
    return
  }
  func.func @transform_0(%arg0: i32, %arg1: i32) -> (i32, i32, i32) {
    %c0_i32 = arith.constant 0 : i32
    %c0_i32_0 = arith.constant 0 : i32
    return %arg0, %c0_i32, %arg1 : i32, i32, i32
  }
  func.func @transform_1(%arg0: i32, %arg1: i32) -> (i32, i32) {
    %c0_i32 = arith.constant 0 : i32
    %c0_i32_0 = arith.constant 0 : i32
    %c0_i32_1 = arith.constant 0 : i32
    return %c0_i32, %c0_i32_0 : i32, i32
  }
  func.func @transform_2(%arg0: i32, %arg1: i32) -> (i32, i32, i32) {
    %c0_i32 = arith.constant 0 : i32
    %c0_i32_0 = arith.constant 0 : i32
    return %arg0, %c0_i32, %arg1 : i32, i32, i32
  }
}

</mosaic_0001>

<llo_original>
// kernel: tpu_custom_call.1
$region0: #{tpu_custom_call.1}
  #allocation0 [shape = 'u32[]', space=smem, size = 0x4, offset = 0x4, fixed_abs, tag = 'smem constant byte address 0x4 - core index']
  #allocation1 [shape = 'u32[144,128]{1,0:T(1,128)}', space=vmem, size = 0x12000, scoped, tag = 'internal scratch']
  %s0 = inlined_call_operand.hbm [shape: f32[2,4,256], index: 0, kind: input, shape index: {}]
  %s1 = inlined_call_operand.vmem [shape: f32[4,2], index: 1, kind: input, shape index: {}]
  %s2 = inlined_call_operand.hbm [shape: f32[2,4,256], index: 2, kind: output, shape index: {}]
  %s3 = sld [smem:[#allocation0]]
  $region45: #{tpu_custom_call.1} parent=0
    _
  %s5 = ssub.s32 1, %s3
  %s6 = scalar_select 0, %s5, %s3
  $region1: #{tpu_custom_call.1} parent=0
    #allocation2 [shape = 'u8[8192]{0}', space=vmem, size = 0x2000, scoped, tag = 'input window, operand 0']
    #allocation3 [shape = 's32[2]{0}', space=sflag, size = 0x8, scoped, tag = 'scoped memory for tpu_custom_call.1']
    #allocation4 [shape = 's32[2]{0}', space=sflag, size = 0x8, scoped, tag = 'scoped memory for tpu_custom_call.1']
    #allocation5 [shape = 'u8[8192]{0}', space=vmem, size = 0x2000, scoped, tag = 'output window, operand 0']
    %7 = vsyncpa [#allocation3], 0
    %s8 = scalar_lea.sflag [#allocation3], 1
    %9 = vsyncpa %s8, 0
    %10 = vsyncpa [#allocation4], 0
    %s11 = scalar_lea.sflag [#allocation4], 1
    %12 = vsyncpa %s11, 0
    loop: start=0, step=1, limit=4
    $region2: #{tpu_custom_call.1} parent=1 // loop_pre_header
      _
    $region3: #{tpu_custom_call.1} parent=1 // loop_header
      %s14 = sphi 0, %s18
      %p15 = scmp.ge.s32.totalorder %s14, 4
      %s21 = sphi 0, %s33
      %s22 = sphi 0, %s29
      %s23 = sphi 0, %s21
      %s24 = sphi 0, %s22
      %s25 = sphi 0, %s23
      %s26 = sphi 0, %s24
      %s38 = sphi 0, %s40
      %s41 = sphi 0, %s38
      %s42 = sphi 0, %s41
      %s58 = sphi 0, %s42
      %s62 = sphi 0, %s62
      %s64 = sphi 0, %s62
      %s65 = sphi 0, %s64
      %s79 = sphi 0, %s65
      %s87 = sphi 0, %s89
      %s90 = sphi 0, %s87
      %s91 = sphi 0, %s90
      %s107 = sphi 0, %s91
    $region4: #{tpu_custom_call.1} parent=1 // loop_header_branch
      %17 = sbr.rel (%p15) target = $region8
    $region5: #{tpu_custom_call.1} parent=1 // loop_body
      %s19 = ssub.s32 %s14, 1
      %s20 = ssub.s32 %s14, 2
      %s27 = sadd.s32 1, %s22
      %p28 = scmp.ge.s32.totalorder %s27, 1
      %s29 = scalar_select %p28, 0, %s27
      %s30 = sadd.s32 1, %s21
      %s31 = scalar_select %p28, %s30, %s21
      %p32 = scmp.ge.s32.totalorder %s31, 2
      %s33 = scalar_select %p32, 0, %s31
      %s34 = ssub.s32 %s21, %s33
      %s35 = ssub.s32 %s22, %s29
      %s36 = sor.u32 %s34, %s35
      %p37 = scmp.eq.s32.totalorder %s36, 0
      %s39 = sadd.s32 %s38, 1
      %s40 = scalar_select %p37, %s38, %s39
      %p43 = pneg %p37
      %p44 = scmp.eq.s32.totalorder %s14, 1
      %p45 = por %p43, %p44
      %p46 = scmp.ne.s32.totalorder %s38, %s41
      %p47 = scmp.eq.s32.totalorder %s14, 0
      %p48 = por %p46, %p47
      %p49 = scmp.ne.s32.totalorder %s38, %s41
      %p50 = scmp.eq.s32.totalorder %s19, 1
      %p51 = por %p49, %p50
      %p52 = scmp.ne.s32.totalorder %s41, %s42
      %p53 = scmp.eq.s32.totalorder %s19, 0
      %p54 = por %p52, %p53
      %p55 = scmp.ne.s32.totalorder %s41, %s42
      %p56 = scmp.eq.s32.totalorder %s20, 1
      %p57 = por %p55, %p56
      %p59 = scmp.ne.s32.totalorder %s42, %s58
      %p60 = scmp.eq.s32.totalorder %s20, 0
      %p61 = por %p59, %p60
      %s63 = sadd.s32 %s62, 1
      %p66 = scmp.eq.s32.totalorder %s14, 1
      %p67 = scmp.ne.s32.totalorder %s62, %s64
      %p68 = scmp.eq.s32.totalorder %s14, 0
      %p69 = por %p67, %p68
      %p70 = scmp.ne.s32.totalorder %s62, %s64
      %p71 = scmp.eq.s32.totalorder %s19, 1
      %p72 = por %p70, %p71
      %p73 = scmp.ne.s32.totalorder %s64, %s65
      %p74 = scmp.eq.s32.totalorder %s19, 0
      %p75 = por %p73, %p74
      %p76 = scmp.ne.s32.totalorder %s64, %s65
      %p77 = scmp.eq.s32.totalorder %s20, 1
      %p78 = por %p76, %p77
      %p80 = scmp.ne.s32.totalorder %s65, %s79
      %p81 = scmp.eq.s32.totalorder %s20, 0
      %p82 = por %p80, %p81
      %s83 = ssub.s32 %s21, %s33
      %s84 = ssub.s32 %s22, %s29
      %s85 = sor.u32 %s83, %s84
      %p86 = scmp.eq.s32.totalorder %s85, 0
      %s88 = sadd.s32 %s87, 1
      %s89 = scalar_select %p86, %s87, %s88
      %p92 = pneg %p86
      %p93 = scmp.eq.s32.totalorder %s14, 1
      %p94 = por %p92, %p93
      %p95 = scmp.ne.s32.totalorder %s87, %s90
      %p96 = scmp.eq.s32.totalorder %s14, 0
      %p97 = por %p95, %p96
      %p98 = scmp.ne.s32.totalorder %s87, %s90
      %p99 = scmp.eq.s32.totalorder %s19, 1
      %p100 = por %p98, %p99
      %p101 = scmp.ne.s32.totalorder %s90, %s91
      %p102 = scmp.eq.s32.totalorder %s19, 0
      %p103 = por %p101, %p102
      %p104 = scmp.ne.s32.totalorder %s90, %s91
      %p105 = scmp.eq.s32.totalorder %s20, 1
      %p106 = por %p104, %p105
      %p108 = scmp.ne.s32.totalorder %s91, %s107
      %p109 = scmp.eq.s32.totalorder %s20, 0
      %p110 = por %p108, %p109
      %p111 = scmp.le.s32.totalorder 1, %s14
      %p112 = scmp.lt.s32.totalorder %s14, 3
      %p113 = pnand %p111, %p112
      %p114 = pneg %p113
      // Predicated region
      $region9: #{tpu_custom_call.1} parent=5 // pred_check
        _
      $region10: #{tpu_custom_call.1} parent=5 // pred_check_branch
        %116 = sbr.rel (%p113) target = $region12
      $region11: #{tpu_custom_call.1} parent=5 // pred_region
        %s117 = ssub.s32 %s14, 1
        // Predicated region
        $region13: #{tpu_custom_call.1} parent=11 // pred_check
          %p118 = pneg %p75
        $region14: #{tpu_custom_call.1} parent=11 // pred_check_branch
          %120 = sbr.rel (%p118) target = $region16
        $region15: #{tpu_custom_call.1} parent=11 // pred_region
          _
        $region16: #{tpu_custom_call.1} parent=11 // pred_fallthru
          _
      $region12: #{tpu_custom_call.1} parent=5 // pred_fallthru
        _
      %p121 = scmp.lt.s32.totalorder %s14, 2
      // Predicated region
      $region17: #{tpu_custom_call.1} parent=5 // pred_check
        %p122 = pneg %p121
      $region18: #{tpu_custom_call.1} parent=5 // pred_check_branch
        %124 = sbr.rel (%p122) target = $region20
      $region19: #{tpu_custom_call.1} parent=5 // pred_region
        // Predicated region
        $region21: #{tpu_custom_call.1} parent=19 // pred_check
          %p125 = pneg %p48
        $region22: #{tpu_custom_call.1} parent=19 // pred_check_branch
          %127 = sbr.rel (%p125) target = $region24
        $region23: #{tpu_custom_call.1} parent=19 // pred_region
          %s128 = sand.u32 %s38, 1
          %s129 = scalar_lea.sflag [#allocation3], %s128
          %s130 = sand.u32 %s38, 1
          %s131 = smul.addr %s130, 8
          %s132 = scalar_lea.vmem [#allocation2], %s131
          %s133 = smul.u32 2, %s22
          %s135 = ssub.s32 128, 128
          %136 = vsyncadd %s129, %s135
          %s137 = smul.addr %s21, 2
          %s138 = sadd.s32 %s133, %s137
          %s139 = smul.addr %s138, 64
          %s140 = scalar_lea.hbm %s0, %s139
          %s142 = sshll.u32 %s132, 4
          %s143 = int_to_ptr.vmem [resolvable:$true] %s142
          %145 = dma.hbm_to_vmem [thread:$0]  %s140, 128, %s143, %s129
        $region24: #{tpu_custom_call.1} parent=19 // pred_fallthru
          _
      $region20: #{tpu_custom_call.1} parent=5 // pred_fallthru
        _
      %p146 = scmp.le.s32.totalorder 1, %s14
      %p147 = scmp.lt.s32.totalorder %s14, 3
      %p148 = pnand %p146, %p147
      %p149 = pneg %p148
      // Predicated region
      $region25: #{tpu_custom_call.1} parent=5 // pred_check
        _
      $region26: #{tpu_custom_call.1} parent=5 // pred_check_branch
        %151 = sbr.rel (%p148) target = $region28
      $region27: #{tpu_custom_call.1} parent=5 // pred_region
        %s152 = ssub.s32 %s14, 1
        %s153 = sand.u32 %s41, 1
        %s154 = scalar_lea.sflag [#allocation3], %s153
        %s155 = sand.u32 %s41, 1
        %s156 = smul.addr %s155, 8
        %s157 = scalar_lea.vmem [#allocation2], %s156
        // Predicated region
        $region29: #{tpu_custom_call.1} parent=27 // pred_check
          %p158 = pneg %p54
        $region30: #{tpu_custom_call.1} parent=27 // pred_check_branch
          %160 = sbr.rel (%p158) target = $region32
        $region31: #{tpu_custom_call.1} parent=27 // pred_region
          %161 = dma.done %s154, 128
        $region32: #{tpu_custom_call.1} parent=27 // pred_fallthru
          _
        %s162 = sand.u32 %s41, 1
        %s163 = scalar_lea.sflag [#allocation3], %s162
        %s164 = sand.u32 %s41, 1
        %s165 = smul.addr %s164, 8
        %s166 = scalar_lea.vmem [#allocation2], %s165
        %p167 = pneg %p54
        %p168 = pneg %p51
        %p169 = pneg %p75
        %p170 = pneg %p72
        %p171 = pneg %p103
        %p172 = pneg %p100
        %s173 = sand.u32 %s90, 1
        %s174 = scalar_lea.sflag [#allocation4], %s173
        %s175 = sand.u32 %s90, 1
        %s176 = smul.addr %s175, 8
        %s177 = scalar_lea.vmem [#allocation5], %s176
        %s178 = smul.u32 2, %s24
        %s179 = smul.u32 2, %s24
        %v180 = vld [vmem:[%s157] sm:$0xff]
        %v182 = vcombine.high %v180, %v180
        %vm184 = vcmask 1043456
        %v185 = vsel %vm184, %v180, 0.0
        %v186 = vrot.slane %v185, 4
        %v187 = vadd.f32 %v185, %v186
        %v188 = vrot.slane %v187, 2
        %v189 = vadd.f32 %v187, %v188
        %v190 = vrot.slane %v189, 1
        %v191 = vadd.f32 %v189, %v190
        %v192 = vsel %vm184, %v182, 0.0
        %v193 = vrot.slane %v192, 4
        %v194 = vadd.f32 %v192, %v193
        %v195 = vrot.slane %v194, 2
        %v196 = vadd.f32 %v194, %v195
        %v197 = vrot.slane %v196, 1
        %v198 = vadd.f32 %v196, %v197
        %v199 = vrcp.pop 4.0
        %v200 = vmul.f32 %v191, %v199
        %v201 = vmul.f32 %v198, %v199
        %v204 = vcombine.low %v200, %v201
        %v206 = vsub.f32 %v180, %v204
        %v207 = vmul.f32 %v206, %v206
        %v209 = vcombine.high %v207, %v207
        %v211 = vsel %vm184, %v207, 0.0
        %v212 = vrot.slane %v211, 4
        %v213 = vadd.f32 %v211, %v212
        %v214 = vrot.slane %v213, 2
        %v215 = vadd.f32 %v213, %v214
        %v216 = vrot.slane %v215, 1
        %v217 = vadd.f32 %v215, %v216
        %v218 = vsel %vm184, %v209, 0.0
        %v219 = vrot.slane %v218, 4
        %v220 = vadd.f32 %v218, %v219
        %v221 = vrot.slane %v220, 2
        %v222 = vadd.f32 %v220, %v221
        %v223 = vrot.slane %v222, 1
        %v224 = vadd.f32 %v222, %v223
        %v225 = vmul.f32 %v217, %v199
        %v226 = vmul.f32 %v224, %v199
        %v227 = vadd.f32 %v225, 1e-06
        %v228 = vadd.f32 %v226, 1e-06
        %v229 = vrsqrt.pop %v227
        %v230 = vrsqrt.pop %v228
        %v233 = vcombine.low %v229, %v230
        %v235 = vmul.f32 %v206, %v233
        %v236 = vld [vmem:[%s1] sm:$0xf]
        %238 = vset.pattern.permute.xlu0 0
        %239 = vperm.xlu0 %238, %v236
        %v240 = vpop.permute.xlu0 %239
        %v242 = vunpack.c.l.s4 839922192
        %v243 = vunpack.c.0.s8 %v242
        %v244 = vlaneseq
        %v245 = vshrl.u32 %v244, 7
        %v246 = vsub.s32 %v243, %v245
        %v247 = vrot.slane %v240, %v246
        %v249 = vmul.f32 %v235, %v247
        %250 = vset.pattern.permute.xlu0 1
        %251 = vperm.xlu0 %250, %v236
        %v252 = vpop.permute.xlu0 %251
        %v254 = vunpack.c.l.s4 839922192
        %v255 = vunpack.c.0.s8 %v254
        %v256 = vlaneseq
        %v257 = vshrl.u32 %v256, 7
        %v258 = vsub.s32 %v255, %v257
        %v259 = vrot.slane %v252, %v258
        %v261 = vadd.f32 %v249, %v259
        %262 = vst [vmem:[%s177] sm:$0xff] %v261
        %s263 = sand.u32 %s90, 1
        %s264 = scalar_lea.sflag [#allocation4], %s263
        %s265 = sand.u32 %s90, 1
        %s266 = smul.addr %s265, 8
        %s267 = scalar_lea.vmem [#allocation5], %s266
        // Predicated region
        $region33: #{tpu_custom_call.1} parent=27 // pred_check
          %p268 = pneg %p100
        $region34: #{tpu_custom_call.1} parent=27 // pred_check_branch
          %270 = sbr.rel (%p268) target = $region36
        $region35: #{tpu_custom_call.1} parent=27 // pred_region
          %s271 = smul.u32 2, %s24
          %s273 = ssub.s32 128, 128
          %274 = vsyncadd %s264, %s273
          %s275 = smul.addr %s23, 2
          %s276 = sadd.s32 %s271, %s275
          %s277 = smul.addr %s276, 64
          %s278 = scalar_lea.hbm %s2, %s277
          %s280 = sshll.u32 %s267, 4
          %s281 = int_to_ptr.vmem [resolvable:$true] %s280
          %283 = dma.vmem_to_hbm [thread:$0]  %s281, 128, %s278, %s264
        $region36: #{tpu_custom_call.1} parent=27 // pred_fallthru
          _
      $region28: #{tpu_custom_call.1} parent=5 // pred_fallthru
        _
      %p284 = scmp.le.s32.totalorder 2, %s14
      // Predicated region
      $region37: #{tpu_custom_call.1} parent=5 // pred_check
        %p285 = pneg %p284
      $region38: #{tpu_custom_call.1} parent=5 // pred_check_branch
        %287 = sbr.rel (%p285) target = $region40
      $region39: #{tpu_custom_call.1} parent=5 // pred_region
        %s288 = ssub.s32 %s14, 2
        // Predicated region
        $region41: #{tpu_custom_call.1} parent=39 // pred_check
          %p289 = pneg %p106
        $region42: #{tpu_custom_call.1} parent=39 // pred_check_branch
          %291 = sbr.rel (%p289) target = $region44
        $region43: #{tpu_custom_call.1} parent=39 // pred_region
          %s292 = sand.u32 %s91, 1
          %s293 = scalar_lea.sflag [#allocation4], %s292
          %s294 = sand.u32 %s91, 1
          %s295 = smul.addr %s294, 8
          %s296 = scalar_lea.vmem [#allocation5], %s295
          %297 = dma.done %s293, 128
        $region44: #{tpu_custom_call.1} parent=39 // pred_fallthru
          _
      $region40: #{tpu_custom_call.1} parent=5 // pred_fallthru
        _
    $region6: #{tpu_custom_call.1} parent=1 // loop_footer
      %s18 = sadd.s32 1, %s14
    $region7: #{tpu_custom_call.1} parent=1 // loop_footer_branch
      %13 = sbr.rel target = $region3
    $region8: #{tpu_custom_call.1} parent=1 // loop_exit
      _
    %298 = vsyncpa [#allocation3], 1
    %s299 = scalar_lea.sflag [#allocation3], 1
    %300 = vsyncpa %s299, 1
    %301 = vsyncpa [#allocation4], 1
    %s302 = scalar_lea.sflag [#allocation4], 1
    %303 = vsyncpa %s302, 1

</llo_original>
